<compile_context>
chip_gen: v6e
topology: v6e:2x2x1
jax: 0.10.0
libtpu: 0.0.40
codegen_flags: <defaults>
</compile_context>

<pallas_src>
import functools

import jax
import jax.numpy as jnp
from jax.experimental import pallas as pl
from jax.experimental.pallas import tpu as pltpu

INPUT_SIZE = 2
HIDDEN_SIZE = 16
NUM_CLASSES = 3


def _mlp_kernel(x_ref, w1_ref, b1_ref, w2_ref, b2_ref, o_ref, *, chunk, exp_dtype):
    # x_ref : (INPUT_SIZE, TB)            batch on the 128-lane axis
    # w1_ref: (HIDDEN_SIZE, INPUT_SIZE)   torch fc1.weight layout (out, in)
    # b1_ref: (HIDDEN_SIZE, 1)
    # w2_ref: (NUM_CLASSES, HIDDEN_SIZE)  torch fc2.weight layout (out, in)
    # b2_ref: (NUM_CLASSES, 1)
    # o_ref : (NUM_CLASSES, TB)
    tb = o_ref.shape[1]
    n_chunks = tb // chunk

    # Weights are tiny and VMEM-resident.  Hoist the bias broadcasts out of the
    # chunk loop (JAX does not CSE broadcast_in_dim).
    w1 = w1_ref[...]
    w2 = w2_ref[...]
    b1 = jnp.broadcast_to(b1_ref[...], (HIDDEN_SIZE, chunk))
    b2 = jnp.broadcast_to(b2_ref[...], (NUM_CLASSES, chunk))

    # Inner lane-chunk loop: bounds live temporaries to (HIDDEN, chunk) so the
    # large DMA tile does not force wholesale vreg->VMEM spills.
    @pl.loop(0, n_chunks)
    def _(j):
        c0 = pl.multiple_of(j * chunk, chunk)
        x = x_ref[:, pl.ds(c0, chunk)]                          # (IN, chunk)

        # fc1: K=2 contraction.  Two broadcast FMAs on the VPU (exact f32,
        # trivially cheap; MXU version is optional per review).
        h = (w1[:, 0:1] * x[0:1, :]
             + w1[:, 1:2] * x[1:2, :]
             + b1)                                              # (HID, chunk)

        # torch nn.Softmax() on a 2-D input defaults to dim=1 (features) ==
        # the sublane axis in this transposed layout.
        m = jnp.max(h, axis=0, keepdims=True)                   # (1, chunk)
        e = jnp.exp((h - m).astype(exp_dtype)).astype(jnp.float32)
        s = jnp.sum(e, axis=0, keepdims=True)                   # (1, chunk)
        p = e * pl.reciprocal(s)                                # exact EUP recip

        # fc2: K=16 contraction on the (otherwise idle) MXU slot; bias folded
        # directly into the result -- no zeros-fill + add pass.
        out = jnp.dot(w2, p, preferred_element_type=jnp.float32) + b2

        o_ref[:, pl.ds(c0, chunk)] = out.astype(o_ref.dtype)    # lane-dense store


def _pick_chunk(tb):
    """Largest lane-chunk <= 512 (multiple of 128) that divides the batch tile."""
    for c in (512, 384, 256, 128):
        if tb % c == 0:
            return c
    return tb  # unreachable: tb is always a multiple of 128


def mlp_forward_fm(x_fm, w1, b1, w2, b2, *, tb=32768, exp_dtype=jnp.float32):
    """Feature-major fast path.

    x_fm: (INPUT_SIZE, B) f32 with batch on the trailing (lane) axis.
    w1:   (HIDDEN_SIZE, INPUT_SIZE), b1: (HIDDEN_SIZE,)   -- torch Linear layout
    w2:   (NUM_CLASSES, HIDDEN_SIZE), b2: (NUM_CLASSES,)
    Returns (NUM_CLASSES, B).

    No pad / relayout passes: the ragged last batch tile is handled by Pallas'
    masked boundary DMA.  Set exp_dtype=jnp.bfloat16 on v6e/v7x for extra EUP
    headroom once HBM-bound (keep f32 on v5e / for tight numeric parity).
    """
    B = x_fm.shape[1]
    x_fm = x_fm.astype(jnp.float32)

    # Batch tile: large enough to amortize the ~0.35us/step pipeline overhead,
    # capped so the grid keeps >=4 steps (megacore + pipelining) when B allows.
    b_aligned = pl.cdiv(B, 128) * 128
    tb = max(128, (min(tb, b_aligned) // 128) * 128)
    if B >= 4 * 128:
        tb = min(tb, max(128, (B // (4 * 128)) * 128))
    grid = pl.cdiv(B, tb)
    chunk = _pick_chunk(tb)

    # Explicit VMEM budget: double-buffered I/O + resident weights + slack,
    # kept well under the 64 MiB physical VMEM of v7x.
    io_bytes = 2 * (INPUT_SIZE + NUM_CLASSES) * tb * 4
    vmem_bytes = min(max(io_bytes + (2 << 20), 16 << 20), 48 << 20)

    kernel = functools.partial(_mlp_kernel, chunk=chunk, exp_dtype=exp_dtype)

    return pl.pallas_call(
        kernel,
        out_shape=jax.ShapeDtypeStruct((NUM_CLASSES, B), jnp.float32),
        grid_spec=pltpu.PrefetchScalarGridSpec(
            num_scalar_prefetch=0,
            grid=(grid,),
            in_specs=[
                pl.BlockSpec((INPUT_SIZE, tb), lambda i: (0, i)),
                pl.BlockSpec((HIDDEN_SIZE, INPUT_SIZE), lambda i: (0, 0)),
                pl.BlockSpec((HIDDEN_SIZE, 1), lambda i: (0, 0)),
                pl.BlockSpec((NUM_CLASSES, HIDDEN_SIZE), lambda i: (0, 0)),
                pl.BlockSpec((NUM_CLASSES, 1), lambda i: (0, 0)),
            ],
            out_specs=pl.BlockSpec((NUM_CLASSES, tb), lambda i: (0, i)),
        ),
        compiler_params=pltpu.CompilerParams(
            dimension_semantics=("parallel",),      # shard batch grid over TCs
            vmem_limit_bytes=vmem_bytes,
        ),
    )(x_fm, w1, b1.reshape(HIDDEN_SIZE, 1), w2, b2.reshape(NUM_CLASSES, 1))


def mlp_forward(x, w1, b1, w2, b2, *, tb=32768, exp_dtype=jnp.float32):
    """Torch-layout wrapper: x (B, INPUT_SIZE) -> (B, NUM_CLASSES).

    The two transposes here are the only remaining relayout passes; callers
    that can keep activations feature-major should use mlp_forward_fm directly
    and skip them entirely.
    """
    out_fm = mlp_forward_fm(x.T, w1, b1, w2, b2, tb=tb, exp_dtype=exp_dtype)
    return out_fm.T


def init_params(key):
    """Deterministic init mimicking torch.nn.Linear (uniform +/- 1/sqrt(fan_in)).

    Weights are stored in torch layout (out_features, in_features), which is
    exactly the feature-major layout the kernel consumes -- no transpose needed.
    """
    k1, k2, k3, k4 = jax.random.split(key, 4)
    bound1 = 1.0 / jnp.sqrt(INPUT_SIZE)
    bound2 = 1.0 / jnp.sqrt(HIDDEN_SIZE)
    w1 = jax.random.uniform(k1, (HIDDEN_SIZE, INPUT_SIZE), jnp.float32, -bound1, bound1)
    b1 = jax.random.uniform(k2, (HIDDEN_SIZE,), jnp.float32, -bound1, bound1)
    w2 = jax.random.uniform(k3, (NUM_CLASSES, HIDDEN_SIZE), jnp.float32, -bound2, bound2)
    b2 = jax.random.uniform(k4, (NUM_CLASSES,), jnp.float32, -bound2, bound2)
    return w1, b1, w2, b2


if __name__ == "__main__":
    key = jax.random.PRNGKey(0)
    kx, kp = jax.random.split(key)

    # Small batch, deliberately NOT a multiple of 128 so the pad-free ragged
    # last tile path is exercised on hardware.
    batch = 200
    x = jax.random.normal(kx, (batch, INPUT_SIZE), jnp.float32)
    w1, b1, w2, b2 = init_params(kp)

    out = mlp_forward(x, w1, b1, w2, b2)
    jax.block_until_ready(out)

    # Pure-JAX reference of the same semantics (fc1 -> softmax(dim=1) -> fc2),
    # torch Linear convention: y = x @ W.T + b.
    h_ref = x @ w1.T + b1[None, :]
    p_ref = jax.nn.softmax(h_ref, axis=1)
    ref = p_ref @ w2.T + b2[None, :]

    assert out.shape == (batch, NUM_CLASSES)
    # Exact reciprocal restored (approx removed); the remaining tolerance floor
    # is the MXU's default f32 matmul rounding in kernel and reference paths.
    assert jnp.allclose(out, ref, atol=1e-3, rtol=1e-3), "mismatch vs reference"

    print("KERNEL_OK")
</pallas_src>

<mosaic_0001>
module attributes {stable_mosaic.version = 11 : i64} {
  func.func @_mlp_kernel(%arg0: i32, %arg1: memref<2x256xf32, #tpu.memory_space<vmem>>, %arg2: memref<16x2xf32, #tpu.memory_space<vmem>>, %arg3: memref<16x1xf32, #tpu.memory_space<vmem>>, %arg4: memref<3x16xf32, #tpu.memory_space<vmem>>, %arg5: memref<3x1xf32, #tpu.memory_space<vmem>>, %arg6: memref<3x256xf32, #tpu.memory_space<vmem>>) attributes {dimension_semantics = [#tpu.dimension_semantics<parallel>], iteration_bounds = array<i64: 1>, scalar_prefetch = 0 : i64, scratch_operands = 0 : i64, tpu.core_type = #tpu.core_type<tc>, window_params = [{transform_indices = @transform_0, window_bounds = array<i64: 2, 256>}, {pipeline_mode = #tpu.pipeline_mode<synchronous>, transform_indices = @transform_1, window_bounds = array<i64: 16, 2>}, {pipeline_mode = #tpu.pipeline_mode<synchronous>, transform_indices = @transform_2, window_bounds = array<i64: 16, 1>}, {pipeline_mode = #tpu.pipeline_mode<synchronous>, transform_indices = @transform_3, window_bounds = array<i64: 3, 16>}, {pipeline_mode = #tpu.pipeline_mode<synchronous>, transform_indices = @transform_4, window_bounds = array<i64: 3, 1>}, {transform_indices = @transform_5, window_bounds = array<i64: 3, 256>}]} {
    %c0 = arith.constant 0 : index
    %c0_0 = arith.constant 0 : index
    %0 = vector.load %arg2[%c0, %c0_0] : memref<16x2xf32, #tpu.memory_space<vmem>>, vector<16x2xf32>
    %c0_1 = arith.constant 0 : index
    %c0_2 = arith.constant 0 : index
    %1 = vector.load %arg4[%c0_1, %c0_2] : memref<3x16xf32, #tpu.memory_space<vmem>>, vector<3x16xf32>
    %c0_3 = arith.constant 0 : index
    %c0_4 = arith.constant 0 : index
    %2 = vector.load %arg3[%c0_3, %c0_4] : memref<16x1xf32, #tpu.memory_space<vmem>>, vector<16x1xf32>
    %3 = vector.shape_cast %2 : vector<16x1xf32> to vector<16x1xf32>
    %4 = vector.broadcast %3 : vector<16x1xf32> to vector<16x256xf32>
    %c0_5 = arith.constant 0 : index
    %c0_6 = arith.constant 0 : index
    %5 = vector.load %arg5[%c0_5, %c0_6] : memref<3x1xf32, #tpu.memory_space<vmem>>, vector<3x1xf32>
    %6 = vector.shape_cast %5 : vector<3x1xf32> to vector<3x1xf32>
    %7 = vector.broadcast %6 : vector<3x1xf32> to vector<3x256xf32>
    %c0_i32 = arith.constant 0 : i32
    %c1_i32 = arith.constant 1 : i32
    %8 = arith.muli %c0_i32, %c1_i32 : i32
    %c0_i32_7 = arith.constant 0 : i32
    %9 = arith.addi %c0_i32_7, %8 : i32
    %c256_i32 = arith.constant 256 : i32
    %10 = arith.muli %9, %c256_i32 : i32
    %11 = tpu.assume_multiple %10, 256 : i32
    %c0_8 = arith.constant 0 : index
    %12 = arith.index_cast %11 : i32 to index
    %13 = vector.load %arg1[%c0_8, %12] : memref<2x256xf32, #tpu.memory_space<vmem>>, vector<2x256xf32>
    %14 = vector.extract_strided_slice %0 {offsets = [0, 0], sizes = [16, 1], strides = [1, 1]} : vector<16x2xf32> to vector<16x1xf32>
    %15 = vector.extract_strided_slice %13 {offsets = [0, 0], sizes = [1, 256], strides = [1, 1]} : vector<2x256xf32> to vector<1x256xf32>
    %16 = vector.broadcast %14 : vector<16x1xf32> to vector<16x256xf32>
    %17 = vector.broadcast %15 : vector<1x256xf32> to vector<16x256xf32>
    %18 = arith.mulf %16, %17 : vector<16x256xf32>
    %19 = vector.extract_strided_slice %0 {offsets = [0, 1], sizes = [16, 1], strides = [1, 1]} : vector<16x2xf32> to vector<16x1xf32>
    %20 = vector.extract_strided_slice %13 {offsets = [1, 0], sizes = [1, 256], strides = [1, 1]} : vector<2x256xf32> to vector<1x256xf32>
    %21 = vector.broadcast %19 : vector<16x1xf32> to vector<16x256xf32>
    %22 = vector.broadcast %20 : vector<1x256xf32> to vector<16x256xf32>
    %23 = arith.mulf %21, %22 : vector<16x256xf32>
    %24 = arith.addf %18, %23 : vector<16x256xf32>
    %25 = arith.addf %24, %4 : vector<16x256xf32>
    %cst = arith.constant dense<0xFF800000> : vector<256xf32>
    %26 = vector.multi_reduction <maximumf>, %25, %cst [0] : vector<16x256xf32> to vector<256xf32>
    %27 = vector.shape_cast %26 : vector<256xf32> to vector<1x256xf32>
    %28 = vector.broadcast %27 : vector<1x256xf32> to vector<16x256xf32>
    %29 = arith.subf %25, %28 : vector<16x256xf32>
    %30 = math.exp %29 : vector<16x256xf32>
    %cst_9 = arith.constant dense<0.000000e+00> : vector<256xf32>
    %31 = vector.multi_reduction <add>, %30, %cst_9 [0] : vector<16x256xf32> to vector<256xf32>
    %32 = vector.shape_cast %31 : vector<256xf32> to vector<1x256xf32>
    %33 = tpu.reciprocal %32 : vector<1x256xf32> -> vector<1x256xf32>
    %34 = vector.broadcast %33 : vector<1x256xf32> to vector<16x256xf32>
    %35 = arith.mulf %30, %34 : vector<16x256xf32>
    %cst_10 = arith.constant dense<0.000000e+00> : vector<3x256xf32>
    %36 = tpu.matmul %1, %35, %cst_10 {dimension_numbers = #tpu.dot_dimension_numbers<[1], [0], [0], [1], [0, 0, 1, 1], [], []>} : vector<3x16xf32>, vector<16x256xf32>, vector<3x256xf32> -> vector<3x256xf32>
    %37 = arith.addf %36, %7 : vector<3x256xf32>
    %c0_11 = arith.constant 0 : index
    %38 = arith.index_cast %11 : i32 to index
    %39 = vector.load %arg6[%c0_11, %38] : memref<3x256xf32, #tpu.memory_space<vmem>>, vector<3x256xf32>
    tpu.vector_store %arg6[%c0_11, %38], %37 {strides = array<i32>} : memref<3x256xf32, #tpu.memory_space<vmem>>, vector<3x256xf32>,
    %c1_i32_12 = arith.constant 1 : i32
    return
  }
  func.func @transform_0(%arg0: i32) -> (i32, i32) {
    %c0_i32 = arith.constant 0 : i32
    %c0_i32_0 = arith.constant 0 : i32
    return %c0_i32, %arg0 : i32, i32
  }
  func.func @transform_1(%arg0: i32) -> (i32, i32) {
    %c0_i32 = arith.constant 0 : i32
    %c0_i32_0 = arith.constant 0 : i32
    %c0_i32_1 = arith.constant 0 : i32
    return %c0_i32, %c0_i32_0 : i32, i32
  }
  func.func @transform_2(%arg0: i32) -> (i32, i32) {
    %c0_i32 = arith.constant 0 : i32
    %c0_i32_0 = arith.constant 0 : i32
    %c0_i32_1 = arith.constant 0 : i32
    return %c0_i32, %c0_i32_0 : i32, i32
  }
  func.func @transform_3(%arg0: i32) -> (i32, i32) {
    %c0_i32 = arith.constant 0 : i32
    %c0_i32_0 = arith.constant 0 : i32
    %c0_i32_1 = arith.constant 0 : i32
    return %c0_i32, %c0_i32_0 : i32, i32
  }
  func.func @transform_4(%arg0: i32) -> (i32, i32) {
    %c0_i32 = arith.constant 0 : i32
    %c0_i32_0 = arith.constant 0 : i32
    %c0_i32_1 = arith.constant 0 : i32
    return %c0_i32, %c0_i32_0 : i32, i32
  }
  func.func @transform_5(%arg0: i32) -> (i32, i32) {
    %c0_i32 = arith.constant 0 : i32
    %c0_i32_0 = arith.constant 0 : i32
    return %c0_i32, %arg0 : i32, i32
  }
}

</mosaic_0001>

<llo_original>
// kernel: tpu_custom_call.1
$region0: #{tpu_custom_call.1}
  #allocation0 [shape = 'u32[]', space=smem, size = 0x4, offset = 0x4, fixed_abs, tag = 'smem constant byte address 0x4 - core index']
  #allocation1 [shape = 'u32[144,128]{1,0:T(1,128)}', space=vmem, size = 0x12000, scoped, tag = 'internal scratch']
  %s0 = inlined_call_operand.vmem [shape: f32[2,200], index: 0, kind: input, shape index: {}]
  %s1 = inlined_call_operand.vmem [shape: f32[16,2], index: 1, kind: input, shape index: {}]
  %s2 = inlined_call_operand.vmem [shape: f32[16,1], index: 2, kind: input, shape index: {}]
  %s3 = inlined_call_operand.vmem [shape: f32[3,16], index: 3, kind: input, shape index: {}]
  %s4 = inlined_call_operand.vmem [shape: f32[3,1], index: 4, kind: input, shape index: {}]
  %s5 = inlined_call_operand.hbm [shape: f32[3,200], index: 5, kind: output, shape index: {}]
  %s6 = sld [smem:[#allocation0]]
  $region30: #{tpu_custom_call.1} parent=0
    _
  %s8 = ssub.s32 1, %s6
  %s9 = scalar_select 0, %s8, %s6
  $region1: #{tpu_custom_call.1} parent=0
    #allocation2 [shape = 'u8[4096]{0}', space=vmem, size = 0x1000, scoped, tag = 'output window, operand 0, single buffered']
    #allocation3 [shape = 's32[1]{0}', space=sflag, size = 0x4, scoped, tag = 'scoped memory for tpu_custom_call.1']
    %10 = vsyncpa [#allocation3], 0
    // Predicated region
    $region2: #{tpu_custom_call.1} parent=1 // pred_check
      _
    $region3: #{tpu_custom_call.1} parent=1 // pred_check_branch
      %12 = sbr.rel (0) target = $region5
    $region4: #{tpu_custom_call.1} parent=1 // pred_region
      _
    $region5: #{tpu_custom_call.1} parent=1 // pred_fallthru
      _
    // Predicated region
    $region6: #{tpu_custom_call.1} parent=1 // pred_check
      _
    $region7: #{tpu_custom_call.1} parent=1 // pred_check_branch
      %14 = sbr.rel (0) target = $region9
    $region8: #{tpu_custom_call.1} parent=1 // pred_region
      _
    $region9: #{tpu_custom_call.1} parent=1 // pred_fallthru
      _
    // Predicated region
    $region10: #{tpu_custom_call.1} parent=1 // pred_check
      _
    $region11: #{tpu_custom_call.1} parent=1 // pred_check_branch
      %16 = sbr.rel (0) target = $region13
    $region12: #{tpu_custom_call.1} parent=1 // pred_region
      _
    $region13: #{tpu_custom_call.1} parent=1 // pred_fallthru
      _
    // Predicated region
    $region14: #{tpu_custom_call.1} parent=1 // pred_check
      _
    $region15: #{tpu_custom_call.1} parent=1 // pred_check_branch
      %18 = sbr.rel (0) target = $region17
    $region16: #{tpu_custom_call.1} parent=1 // pred_region
      _
    $region17: #{tpu_custom_call.1} parent=1 // pred_fallthru
      _
    // Predicated region
    $region18: #{tpu_custom_call.1} parent=1 // pred_check
      _
    $region19: #{tpu_custom_call.1} parent=1 // pred_check_branch
      %20 = sbr.rel (0) target = $region21
    $region20: #{tpu_custom_call.1} parent=1 // pred_region
      _
    $region21: #{tpu_custom_call.1} parent=1 // pred_fallthru
      _
    %v21 = vld [vmem:[%s1] sm:$0xff]
    %v22 = vld [vmem:[%s1 + $0x8] sm:$0xff]
    %v23 = vld [vmem:[%s3] sm:$0x7]
    %v24 = vld [vmem:[%s2] sm:$0xff]
    %v25 = vld [vmem:[%s2 + $0x8] sm:$0xff]
    %27 = vset.pattern.permute.xlu0 0
    %28 = vperm.xlu0 %27, %v24
    %v29 = vpop.permute.xlu0 %28
    %32 = vset.pattern.permute.xlu0 0
    %33 = vperm.xlu0 %32, %v25
    %v34 = vpop.permute.xlu0 %33
    %v36 = vld [vmem:[%s4] sm:$0x7]
    %38 = vset.pattern.permute.xlu0 0
    %39 = vperm.xlu0 %38, %v36
    %v40 = vpop.permute.xlu0 %39
    %v42 = vld [vmem:[%s0] sm:$0xf]
    %44 = vset.pattern.permute.xlu0 0
    %45 = vperm.xlu0 %44, %v21
    %v46 = vpop.permute.xlu0 %45
    %49 = vset.pattern.permute.xlu0 0
    %50 = vperm.xlu0 %49, %v22
    %v51 = vpop.permute.xlu0 %50
    %v54 = vlaneseq
    %v55 = vshrl.u32 %v54, 7
    %v56 = vsub.s32 0, %v55
    %v57 = vrot.slane %v42, %v56
    %v58 = vlaneseq
    %v59 = vshrl.u32 %v58, 7
    %v60 = vsub.s32 2, %v59
    %v61 = vrot.slane %v42, %v60
    %v64 = vlaneseq
    %v65 = vshrl.u32 %v64, 7
    %v66 = vsub.s32 0, %v65
    %v67 = vrot.slane %v57, %v66
    %v68 = vlaneseq
    %v69 = vshrl.u32 %v68, 7
    %v70 = vsub.s32 0, %v69
    %v71 = vrot.slane %v61, %v70
    %v72 = vmul.f32 %v46, %v67
    %v73 = vmul.f32 %v46, %v71
    %v74 = vmul.f32 %v51, %v67
    %v75 = vmul.f32 %v51, %v71
    %76 = vset.pattern.permute.xlu0 1
    %77 = vperm.xlu0 %76, %v21
    %v78 = vpop.permute.xlu0 %77
    %80 = vset.pattern.permute.xlu0 1
    %81 = vperm.xlu0 %80, %v22
    %v82 = vpop.permute.xlu0 %81
    %v84 = vlaneseq
    %v85 = vshrl.u32 %v84, 7
    %v86 = vsub.s32 1, %v85
    %v87 = vrot.slane %v42, %v86
    %v88 = vlaneseq
    %v89 = vshrl.u32 %v88, 7
    %v90 = vsub.s32 3, %v89
    %v91 = vrot.slane %v42, %v90
    %v94 = vlaneseq
    %v95 = vshrl.u32 %v94, 7
    %v96 = vsub.s32 1, %v95
    %v97 = vrot.slane %v87, %v96
    %v98 = vlaneseq
    %v99 = vshrl.u32 %v98, 7
    %v100 = vsub.s32 1, %v99
    %v101 = vrot.slane %v91, %v100
    %v102 = vmul.f32 %v78, %v97
    %v103 = vmul.f32 %v78, %v101
    %v104 = vmul.f32 %v82, %v97
    %v105 = vmul.f32 %v82, %v101
    %v106 = vadd.f32 %v72, %v102
    %v107 = vadd.f32 %v73, %v103
    %v108 = vadd.f32 %v74, %v104
    %v109 = vadd.f32 %v75, %v105
    %v110 = vadd.f32 %v106, %v29
    %v111 = vadd.f32 %v107, %v29
    %v112 = vadd.f32 %v108, %v34
    %v113 = vadd.f32 %v109, %v34
    %v114 = vmax.f32 %v110, %v112
    %v115 = vrot.slane %v114, 4
    %v116 = vmax.f32 %v114, %v115
    %v117 = vrot.slane %v116, 2
    %v118 = vmax.f32 %v116, %v117
    %v119 = vrot.slane %v118, 1
    %v120 = vmax.f32 %v118, %v119
    %v121 = vmax.f32 %v111, %v113
    %v122 = vrot.slane %v121, 4
    %v123 = vmax.f32 %v121, %v122
    %v124 = vrot.slane %v123, 2
    %v125 = vmax.f32 %v123, %v124
    %v126 = vrot.slane %v125, 1
    %v127 = vmax.f32 %v125, %v126
    %v128 = vsub.f32 %v110, %v120
    %v129 = vsub.f32 %v111, %v127
    %v130 = vsub.f32 %v112, %v120
    %v131 = vsub.f32 %v113, %v127
    %v132 = vmul.f32 %v128, 1.442695
    %v133 = vpow.pop %v132
    %v134 = vmul.f32 %v129, 1.442695
    %v135 = vpow.pop %v134
    %v136 = vmul.f32 %v130, 1.442695
    %v137 = vpow.pop %v136
    %v138 = vmul.f32 %v131, 1.442695
    %v139 = vpow.pop %v138
    %v140 = vadd.f32 %v133, %v137
    %v141 = vrot.slane %v140, 4
    %v142 = vadd.f32 %v140, %v141
    %v143 = vrot.slane %v142, 2
    %v144 = vadd.f32 %v142, %v143
    %v145 = vrot.slane %v144, 1
    %v146 = vadd.f32 %v144, %v145
    %v147 = vadd.f32 %v135, %v139
    %v148 = vrot.slane %v147, 4
    %v149 = vadd.f32 %v147, %v148
    %v150 = vrot.slane %v149, 2
    %v151 = vadd.f32 %v149, %v150
    %v152 = vrot.slane %v151, 1
    %v153 = vadd.f32 %v151, %v152
    %v154 = vrcp.pop %v146
    %v155 = vrcp.pop %v153
    %v156 = vmul.f32 %v133, %v154
    %v157 = vmul.f32 %v135, %v155
    %v158 = vmul.f32 %v137, %v154
    %v159 = vmul.f32 %v139, %v155
    %vm160 = vcmask 130048
    %v162 = vsel %vm160, %v23, 0
    %164 = vmatprep.subr.mxu0 0.0
    %165 = vmatpush1.msra.mxu0 0.0
    %166 = vmatprep.subr.mxu0 0.0
    %167 = vmatpush1.msra.mxu0 0.0
    %168 = vmatprep.subr.mxu0 0.0
    %169 = vmatpush1.msra.mxu0 0.0
    %170 = vmatprep.subr.mxu0 0.0
    %171 = vmatpush1.msra.mxu0 0.0
    %172 = vmatprep.subr.mxu0 0.0
    %173 = vmatpush1.msra.mxu0 0.0
    %174 = vmatprep.subr.mxu0 0.0
    %175 = vmatpush1.msra.mxu0 0.0
    %176 = vmatprep.subr.mxu0 0.0
    %177 = vmatpush1.msra.mxu0 0.0
    %178 = vmatprep.subr.mxu0 0.0
    %179 = vmatpush1.msra.mxu0 0.0
    %180 = vmatprep.subr.mxu0 0.0
    %181 = vmatpush1.msra.mxu0 0.0
    %182 = vmatprep.subr.mxu0 0.0
    %183 = vmatpush1.msra.mxu0 0.0
    %184 = vmatprep.subr.mxu0 0.0
    %185 = vmatpush1.msra.mxu0 0.0
    %186 = vmatprep.subr.mxu0 0.0
    %187 = vmatpush1.msra.mxu0 0.0
    %188 = vmatprep.subr.mxu0 0.0
    %189 = vmatpush1.msra.mxu0 0.0
    %190 = vmatprep.subr.mxu0 0.0
    %191 = vmatpush1.msra.mxu0 0.0
    %192 = vmatprep.subr.mxu0 %v159
    %193 = vmatpush1.msra.mxu0 %v158
    %194 = vmatprep.subr.mxu0 %v157
    %195 = vmatpush1.msra.mxu0 %v156
    %196 = vmatprep.subr.mxu0 0.0
    %197 = vmatpush2.msra.mxu0 0.0
    %198 = vmatprep.subr.mxu0 0.0
    %199 = vmatpush2.msra.mxu0 0.0
    %200 = vmatprep.subr.mxu0 0.0
    %201 = vmatpush2.msra.mxu0 0.0
    %202 = vmatprep.subr.mxu0 0.0
    %203 = vmatpush2.msra.mxu0 0.0
    %204 = vmatprep.subr.mxu0 0.0
    %205 = vmatpush2.msra.mxu0 0.0
    %206 = vmatprep.subr.mxu0 0.0
    %207 = vmatpush2.msra.mxu0 0.0
    %208 = vmatprep.subr.mxu0 0.0
    %209 = vmatpush2.msra.mxu0 0.0
    %210 = vmatprep.subr.mxu0 0.0
    %211 = vmatpush2.msra.mxu0 0.0
    %212 = vmatprep.subr.mxu0 0.0
    %213 = vmatpush2.msra.mxu0 0.0
    %214 = vmatprep.subr.mxu0 0.0
    %215 = vmatpush2.msra.mxu0 0.0
    %216 = vmatprep.subr.mxu0 0.0
    %217 = vmatpush2.msra.mxu0 0.0
    %218 = vmatprep.subr.mxu0 0.0
    %219 = vmatpush2.msra.mxu0 0.0
    %220 = vmatprep.subr.mxu0 0.0
    %221 = vmatpush2.msra.mxu0 0.0
    %222 = vmatprep.subr.mxu0 0.0
    %223 = vmatpush2.msra.mxu0 0.0
    %224 = vmatprep.subr.mxu0 0.0
    %225 = vmatpush2.msra.mxu0 0.0
    %226 = vmatprep.subr.mxu0 0.0
    %227 = vmatpush2.msra.mxu0 0.0
    %228 = vmatprep.mubr.f32.mxu0 0.0
    %229 = vmatmul.mubr.f32.gmra.mxu0 %v162
    %v230 = vpop.f32.mrf.mxu0
    %v231 = vadd.f32 %v40, %v230
    %v232 = vpop.f32.mrf.mxu0
    %v233 = vadd.f32 %v40, %v232
    %234 = vdwg.mxu0
    %v237 = vcombine.low %v231, %v233
    %239 = vst [vmem:[#allocation2] sm:$0x77] %v237
    // Predicated region
    $region22: #{tpu_custom_call.1} parent=1 // pred_check
      _
    $region23: #{tpu_custom_call.1} parent=1 // pred_check_branch
      %241 = sbr.rel (0) target = $region25
    $region24: #{tpu_custom_call.1} parent=1 // pred_region
      %s243 = ssub.s32 128, 128
      %244 = vsyncadd [#allocation3], %s243
      %s246 = sshll.u32 [#allocation2], 4
      %s247 = int_to_ptr.vmem [resolvable:$true] %s246
      %249 = dma.vmem_to_hbm [thread:$0]  %s247, 128, %s5, [#allocation3]
    $region25: #{tpu_custom_call.1} parent=1 // pred_fallthru
      _
    // Predicated region
    $region26: #{tpu_custom_call.1} parent=1 // pred_check
      _
    $region27: #{tpu_custom_call.1} parent=1 // pred_check_branch
      %251 = sbr.rel (0) target = $region29
    $region28: #{tpu_custom_call.1} parent=1 // pred_region
      %252 = dma.done [#allocation3], 128
    $region29: #{tpu_custom_call.1} parent=1 // pred_fallthru
      _
    %253 = vsyncpa [#allocation3], 1

</llo_original>
